<compile_context>
chip_gen: v7x
topology: tpu7x:2x2x1
jax: 0.10.0
libtpu: 0.0.40
codegen_flags: <defaults>
</compile_context>

<pallas_src>
import functools

import jax
import jax.numpy as jnp
from jax.experimental import pallas as pl
from jax.experimental.pallas import tpu as pltpu


def _linear2_softmax_kernel(x_ref, w2_ref, b2_ref, o_ref):
    # x_ref : (TB, IN)  VMEM  batch tile of inputs
    # w2_ref: (IN, 2)   VMEM  columns [w0 - w1, w1 - w0]
    # b2_ref: (1, 2)    VMEM  [b0 - b1, b1 - b0]
    # o_ref : (TB, 2)   VMEM  [p0, p1] per row
    d = jnp.dot(x_ref[...], w2_ref[...], preferred_element_type=jnp.float32)
    d = d + b2_ref[...]                                   # broadcast bias delta
    # sigmoid: exp on the EUP slot, one vector add + divide on the VPU.
    o_ref[...] = (1.0 / (1.0 + jnp.exp(-d))).astype(o_ref.dtype)


@functools.partial(jax.jit, static_argnames=("block_b",))
def linear_softmax(x, w, b, *, block_b=8192):
    """softmax(x @ w.T + b, axis=1) with w: (2, IN) in PyTorch nn.Linear layout."""
    B, IN = x.shape
    OUT = w.shape[0]  # == 2

    # Tiny O(IN) parameter prep (constant-folded in practice; negligible vs batch).
    dw = (w[0, :] - w[1, :]).astype(jnp.float32)                      # (IN,)
    w2 = jnp.stack([dw, -dw], axis=1)                                 # (IN, 2)
    db = (b[0] - b[1]).astype(jnp.float32)
    b2 = jnp.stack([db, -db]).reshape(1, OUT)                         # (1, 2)

    tb = min(block_b, B)
    grid = (pl.cdiv(B, tb),)

    return pl.pallas_call(
        _linear2_softmax_kernel,
        out_shape=jax.ShapeDtypeStruct((B, OUT), jnp.float32),
        grid=grid,
        in_specs=[
            pl.BlockSpec((tb, IN), lambda i: (i, 0)),     # x: batch-tiled stream
            pl.BlockSpec((IN, OUT), lambda i: (0, 0)),    # w2: resident
            pl.BlockSpec((1, OUT), lambda i: (0, 0)),     # b2: resident
        ],
        out_specs=pl.BlockSpec((tb, OUT), lambda i: (i, 0)),
        compiler_params=pltpu.CompilerParams(
            dimension_semantics=("parallel",),
            vmem_limit_bytes=32 << 20,
        ),
        cost_estimate=pl.CostEstimate(
            flops=2 * B * IN * OUT + 5 * B * OUT,
            transcendentals=B * OUT,
            bytes_accessed=B * IN * 4 + IN * OUT * 4 + OUT * 4 + B * OUT * 4,
        ),
    )(x, w2, b2)


if __name__ == "__main__":
    key = jax.random.PRNGKey(0)
    kx, kw, kb = jax.random.split(key, 3)

    B, IN, OUT = 8, 20, 2

    # nn.Linear-style init: U(-1/sqrt(in), 1/sqrt(in)); weight kept in PyTorch
    # (out_features, in_features) layout, bias (out_features,).
    bound = 1.0 / (IN ** 0.5)
    w = jax.random.uniform(kw, (OUT, IN), jnp.float32, -bound, bound)
    b = jax.random.uniform(kb, (OUT,), jnp.float32, -bound, bound)
    x = jax.random.normal(kx, (B, IN), jnp.float32)

    out = jax.block_until_ready(linear_softmax(x, w, b))

    # Reference: the original module semantics in plain JAX.
    ref = jax.nn.softmax(x @ w.T + b, axis=1)
    assert out.shape == (B, OUT)
    assert jnp.allclose(out, ref, atol=1e-5, rtol=1e-5), float(
        jnp.max(jnp.abs(out - ref))
    )

    print("KERNEL_OK")
</pallas_src>

<mosaic_0001>
module attributes {stable_mosaic.version = 11 : i64} {
  func.func @_linear2_softmax_kernel(%arg0: i32, %arg1: memref<8x20xf32, #tpu.memory_space<vmem>>, %arg2: memref<20x2xf32, #tpu.memory_space<vmem>>, %arg3: memref<1x2xf32, #tpu.memory_space<vmem>>, %arg4: memref<8x2xf32, #tpu.memory_space<vmem>>) attributes {dimension_semantics = [#tpu.dimension_semantics<parallel>], iteration_bounds = array<i64: 1>, scalar_prefetch = 0 : i64, scratch_operands = 0 : i64, tpu.core_type = #tpu.core_type<tc>, window_params = [{transform_indices = @transform_0, window_bounds = array<i64: 8, 20>}, {pipeline_mode = #tpu.pipeline_mode<synchronous>, transform_indices = @transform_1, window_bounds = array<i64: 20, 2>}, {pipeline_mode = #tpu.pipeline_mode<synchronous>, transform_indices = @transform_2, window_bounds = array<i64: 1, 2>}, {transform_indices = @transform_3, window_bounds = array<i64: 8, 2>}]} {
    %c0 = arith.constant 0 : index
    %c0_0 = arith.constant 0 : index
    %0 = vector.load %arg1[%c0, %c0_0] : memref<8x20xf32, #tpu.memory_space<vmem>>, vector<8x20xf32>
    %c0_1 = arith.constant 0 : index
    %c0_2 = arith.constant 0 : index
    %1 = vector.load %arg2[%c0_1, %c0_2] : memref<20x2xf32, #tpu.memory_space<vmem>>, vector<20x2xf32>
    %cst = arith.constant dense<0.000000e+00> : vector<8x2xf32>
    %2 = tpu.matmul %0, %1, %cst {dimension_numbers = #tpu.dot_dimension_numbers<[1], [0], [0], [1], [0, 0, 1, 1], [], []>} : vector<8x20xf32>, vector<20x2xf32>, vector<8x2xf32> -> vector<8x2xf32>
    %c0_3 = arith.constant 0 : index
    %c0_4 = arith.constant 0 : index
    %3 = vector.load %arg3[%c0_3, %c0_4] : memref<1x2xf32, #tpu.memory_space<vmem>>, vector<1x2xf32>
    %4 = vector.broadcast %3 : vector<1x2xf32> to vector<8x2xf32>
    %5 = arith.addf %2, %4 : vector<8x2xf32>
    %cst_5 = arith.constant 0.000000e+00 : f32
    %6 = vector.broadcast %cst_5 : f32 to vector<8x2xf32>
    %7 = arith.subf %6, %5 : vector<8x2xf32>
    %8 = math.exp %7 : vector<8x2xf32>
    %cst_6 = arith.constant 1.000000e+00 : f32
    %9 = vector.broadcast %cst_6 : f32 to vector<8x2xf32>
    %10 = arith.addf %9, %8 : vector<8x2xf32>
    %cst_7 = arith.constant 1.000000e+00 : f32
    %11 = vector.broadcast %cst_7 : f32 to vector<8x2xf32>
    %12 = arith.divf %11, %10 : vector<8x2xf32>
    %c0_8 = arith.constant 0 : index
    %c0_9 = arith.constant 0 : index
    %13 = vector.load %arg4[%c0_8, %c0_9] : memref<8x2xf32, #tpu.memory_space<vmem>>, vector<8x2xf32>
    tpu.vector_store %arg4[%c0_8, %c0_9], %12 {strides = array<i32>} : memref<8x2xf32, #tpu.memory_space<vmem>>, vector<8x2xf32>,
    return
  }
  func.func @transform_0(%arg0: i32) -> (i32, i32) {
    %c0_i32 = arith.constant 0 : i32
    %c0_i32_0 = arith.constant 0 : i32
    return %arg0, %c0_i32 : i32, i32
  }
  func.func @transform_1(%arg0: i32) -> (i32, i32) {
    %c0_i32 = arith.constant 0 : i32
    %c0_i32_0 = arith.constant 0 : i32
    %c0_i32_1 = arith.constant 0 : i32
    return %c0_i32, %c0_i32_0 : i32, i32
  }
  func.func @transform_2(%arg0: i32) -> (i32, i32) {
    %c0_i32 = arith.constant 0 : i32
    %c0_i32_0 = arith.constant 0 : i32
    %c0_i32_1 = arith.constant 0 : i32
    return %c0_i32, %c0_i32_0 : i32, i32
  }
  func.func @transform_3(%arg0: i32) -> (i32, i32) {
    %c0_i32 = arith.constant 0 : i32
    %c0_i32_0 = arith.constant 0 : i32
    return %arg0, %c0_i32 : i32, i32
  }
}

</mosaic_0001>

<llo_original>
// kernel: linear_softmax.1
$region0: #{linear_softmax.1}
  #allocation0 [shape = 'u32[]', space=smem, size = 0x4, offset = 0x4, fixed_abs, tag = 'smem constant byte address 0x4 - core index']
  #allocation1 [shape = 'u32[144,128]{1,0:T(1,128)}', space=vmem, size = 0x12000, scoped, tag = 'internal scratch']
  %s0 = inlined_call_operand.vmem [shape: f32[8,20], index: 0, kind: input, shape index: {}]
  %s1 = inlined_call_operand.vmem [shape: f32[20,2], index: 1, kind: input, shape index: {}]
  %s2 = inlined_call_operand.vmem [shape: f32[1,2], index: 2, kind: input, shape index: {}]
  %s3 = inlined_call_operand.vmem [shape: f32[8,2], index: 3, kind: output, shape index: {}]
  %s4 = sld [smem:[#allocation0]]
  $region22: #{linear_softmax.1} parent=0
    _
  %s6 = ssub.s32 1, %s4
  %s7 = scalar_select 0, %s6, %s4
  // Predicated region
  $region2: #{linear_softmax.1} parent=0 // pred_check
    _
  $region3: #{linear_softmax.1} parent=0 // pred_check_branch
    %9 = sbr.rel (0) target = $region5
  $region4: #{linear_softmax.1} parent=0 // pred_region
    _
  $region5: #{linear_softmax.1} parent=0 // pred_fallthru
    _
  // Predicated region
  $region6: #{linear_softmax.1} parent=0 // pred_check
    _
  $region7: #{linear_softmax.1} parent=0 // pred_check_branch
    %11 = sbr.rel (0) target = $region9
  $region8: #{linear_softmax.1} parent=0 // pred_region
    _
  $region9: #{linear_softmax.1} parent=0 // pred_fallthru
    _
  // Predicated region
  $region10: #{linear_softmax.1} parent=0 // pred_check
    _
  $region11: #{linear_softmax.1} parent=0 // pred_check_branch
    %13 = sbr.rel (0) target = $region13
  $region12: #{linear_softmax.1} parent=0 // pred_region
    _
  $region13: #{linear_softmax.1} parent=0 // pred_fallthru
    _
  %v14 = vld [vmem:[%s0] sm:$0xff]
  %v15 = vld [vmem:[%s1] sm:$0xff]
  %v16 = vld [vmem:[%s1 + $0x8] sm:$0xff]
  %v17 = vld [vmem:[%s1 + $0x10] sm:$0xf]
  %v18 = vld [vmem:[%s2] sm:$0x1]
  %v20 = vlaneseq
  %v21 = vshrl.u32 %v20, 7
  %v22 = vsub.s32 0, %v21
  %v23 = vrot.slane %v18, %v22
  %vm25 = vcmask 162816
  %v27 = vsel %vm25, %v14, 0
  %vm29 = vcmask 1043456
  %v31 = vsel %vm29, %v17, 0
  %33 = vmatprep.subr.mxu0 0.0
  %34 = vmatpush1.msra.mxu0 %v15
  %35 = vmatprep.subr.mxu0 0.0
  %36 = vmatpush1.msra.mxu0 %v16
  %37 = vmatprep.subr.mxu0 0.0
  %38 = vmatpush1.msra.mxu0 %v31
  %39 = vmatprep.subr.mxu0 0.0
  %40 = vmatpush1.msra.mxu0 0.0
  %41 = vmatprep.subr.mxu0 0.0
  %42 = vmatpush1.msra.mxu0 0.0
  %43 = vmatprep.subr.mxu0 0.0
  %44 = vmatpush1.msra.mxu0 0.0
  %45 = vmatprep.subr.mxu0 0.0
  %46 = vmatpush1.msra.mxu0 0.0
  %47 = vmatprep.subr.mxu0 0.0
  %48 = vmatpush1.msra.mxu0 0.0
  %49 = vmatprep.subr.mxu0 0.0
  %50 = vmatpush1.msra.mxu0 0.0
  %51 = vmatprep.subr.mxu0 0.0
  %52 = vmatpush1.msra.mxu0 0.0
  %53 = vmatprep.subr.mxu0 0.0
  %54 = vmatpush1.msra.mxu0 0.0
  %55 = vmatprep.subr.mxu0 0.0
  %56 = vmatpush1.msra.mxu0 0.0
  %57 = vmatprep.subr.mxu0 0.0
  %58 = vmatpush1.msra.mxu0 0.0
  %59 = vmatprep.subr.mxu0 0.0
  %60 = vmatpush1.msra.mxu0 0.0
  %61 = vmatprep.subr.mxu0 0.0
  %62 = vmatpush1.msra.mxu0 0.0
  %63 = vmatprep.subr.mxu0 0.0
  %64 = vmatpush1.msra.mxu0 0.0
  %65 = vmatprep.subr.mxu0 0.0
  %66 = vmatpush1.msra.mxu0 0.0
  %67 = vmatprep.subr.mxu0 0.0
  %68 = vmatpush1.msra.mxu0 0.0
  %69 = vmatprep.subr.mxu0 0.0
  %70 = vmatpush1.msra.mxu0 0.0
  %71 = vmatprep.subr.mxu0 0.0
  %72 = vmatpush1.msra.mxu0 0.0
  %73 = vmatprep.subr.mxu0 0.0
  %74 = vmatpush1.msra.mxu0 0.0
  %75 = vmatprep.subr.mxu0 0.0
  %76 = vmatpush1.msra.mxu0 0.0
  %77 = vmatprep.subr.mxu0 0.0
  %78 = vmatpush1.msra.mxu0 0.0
  %79 = vmatprep.subr.mxu0 0.0
  %80 = vmatpush1.msra.mxu0 0.0
  %81 = vmatprep.subr.mxu0 0.0
  %82 = vmatpush1.msra.mxu0 0.0
  %83 = vmatprep.subr.mxu0 0.0
  %84 = vmatpush1.msra.mxu0 0.0
  %85 = vmatprep.subr.mxu0 0.0
  %86 = vmatpush1.msra.mxu0 0.0
  %87 = vmatprep.subr.mxu0 0.0
  %88 = vmatpush1.msra.mxu0 0.0
  %89 = vmatprep.subr.mxu0 0.0
  %90 = vmatpush1.msra.mxu0 0.0
  %91 = vmatprep.subr.mxu0 0.0
  %92 = vmatpush1.msra.mxu0 0.0
  %93 = vmatprep.subr.mxu0 0.0
  %94 = vmatpush1.msra.mxu0 0.0
  %95 = vmatprep.subr.mxu0 0.0
  %96 = vmatpush1.msra.mxu0 0.0
  %97 = vmatprep.mubr.f32.mxu0 0.0
  %98 = vmatmul.mubr.f32.gmra.mrb[0].mxu0 %v27
  %v99 = vpop.f32.mrb[0].mxu0
  %v100 = vadd.f32 %v23, %v99
  %v101 = vpop.f32.mrb[0].mxu0
  %102 = vdwg.mxu0
  %v103 = vsub.f32 0.0, %v100
  %v104 = vmul.f32 %v103, 1.442695
  %v105 = vpow.pop %v104
  %v106 = vadd.f32 %v105, 1.0
  %v107 = vrcp.pop %v106
  %v108 = vmul.f32 1.0, %v107
  %vm109 = vcmask 15360
  %110 = vst.msk [vmem:[%s3] sm:$0xff] %vm109, %v108
  // Predicated region
  $region14: #{linear_softmax.1} parent=0 // pred_check
    _
  $region15: #{linear_softmax.1} parent=0 // pred_check_branch
    %112 = sbr.rel (0) target = $region17
  $region16: #{linear_softmax.1} parent=0 // pred_region
    _
  $region17: #{linear_softmax.1} parent=0 // pred_fallthru
    _
  // Predicated region
  $region18: #{linear_softmax.1} parent=0 // pred_check
    _
  $region19: #{linear_softmax.1} parent=0 // pred_check_branch
    %114 = sbr.rel (0) target = $region21
  $region20: #{linear_softmax.1} parent=0 // pred_region
    _
  $region21: #{linear_softmax.1} parent=0 // pred_fallthru
    _

</llo_original>
